<compile_context>
chip_gen: v7x
topology: tpu7x:2x2x1
jax: 0.10.0
libtpu: 0.0.40
codegen_flags: <defaults>
</compile_context>

<pallas_src>
import functools
import math

import jax
import jax.numpy as jnp
from jax.experimental import pallas as pl
from jax.experimental.pallas import tpu as pltpu

_LANES = 128
_SUBLANES = 8


def _xent_kernel(lp_ref, tgt_ref, out_ref, *, pad_index, smoothing, vocab,
                 row_tile, vocab_tile, unroll):
    """Accumulate sum(weight * log_prob) of one (row_tile, vocab_tile) tile.

    lp_ref : (row_tile, vocab_tile) log-probabilities (widened to f32 per slice)
    tgt_ref: (row_tile, 1) int32 targets (padded rows carry pad_index)
    out_ref: (8, 128) f32 per-row-block partial sums, carried across grid axis 1
    """
    j = pl.program_id(1)                       # vocab-block index (reduction axis)
    col_base = j * vocab_tile
    n_lane_blocks = vocab_tile // _LANES
    n_groups = row_tile // _SUBLANES

    lane_iota = jax.lax.broadcasted_iota(jnp.int32, (1, _LANES), 1)

    if smoothing > 0.0:
        uni = float(smoothing) / float(vocab - 2)
        w_tgt = 1.0 - float(smoothing)

    acc8 = jnp.zeros((_SUBLANES, _LANES), jnp.float32)

    for b in range(n_lane_blocks):
        # Per-lane-block column constants: hoisted out of the row-group loop.
        col_ids = lane_iota + (col_base + b * _LANES)            # (1, 128) int32
        col_bad = col_ids >= vocab                               # ragged V tail
        if smoothing > 0.0:
            col_bad = col_bad | (col_ids == pad_index)           # pad column

        def group_body(g, acc):
            r = pl.multiple_of(g * _SUBLANES, _SUBLANES)
            tgt_g = tgt_ref[pl.ds(r, _SUBLANES), :]              # (8, 1) int32
            lp_gb = lp_ref[pl.ds(r, _SUBLANES),
                           b * _LANES:(b + 1) * _LANES].astype(jnp.float32)
            onehot = col_ids == tgt_g                            # (8, 128)
            if smoothing > 0.0:
                padrow = tgt_g == pad_index                      # (8, 1)
                w = jnp.where(onehot, w_tgt, uni)
                bad = col_bad | padrow                           # (8, 128)
                # Select (not multiply) masks bad positions -> no 0 * -inf NaNs.
                contrib = jnp.where(bad, 0.0, w * lp_gb)
            else:
                notpad = tgt_g != pad_index                      # (8, 1)
                contrib = jnp.where(onehot & notpad, lp_gb, 0.0)
            return acc + contrib

        acc8 = jax.lax.fori_loop(0, n_groups, group_body, acc8, unroll=unroll)

    @pl.when(j == 0)
    def _():
        out_ref[...] = jnp.zeros_like(out_ref)

    out_ref[...] += acc8


def _round_up(x, m):
    return (x + m - 1) // m * m


def _vmem_capacity_bytes():
    try:
        info = pltpu.get_tpu_info()
        cap = getattr(info, "vmem_capacity_bytes", None)
        if cap:
            return int(cap)
    except Exception:
        pass
    return 64 * 1024 * 1024   # conservative per-TensorCore default (v7x)


def xent_loss(log_probs, targets, *, pad_index, smoothing=0.0, vocab_tile=4096):
    """Pallas implementation of XentLoss.forward (sum-reduced scalar loss)."""
    vocab = log_probs.shape[-1]
    if smoothing > 0.0 and vocab <= 2:
        raise ValueError("label smoothing requires vocab_size > 2")

    lp = log_probs.reshape(-1, vocab)
    tgt = targets.reshape(-1).astype(jnp.int32)
    n = lp.shape[0]
    itemsize = jnp.dtype(lp.dtype).itemsize

    # --- vocab (lane) tiling: tv multiple of 128; ragged tail masked in-kernel.
    v128 = _round_up(vocab, _LANES)
    tv = min(_round_up(min(int(vocab_tile), v128), _LANES), v128)
    num_v_blocks = pl.cdiv(vocab, tv)

    # --- row (sublane) tiling: sized from the chip's VMEM capacity ----------
    vmem_cap = _vmem_capacity_bytes()
    lp_budget = int(vmem_cap * 0.40)             # double-buffered lp tile budget
    rows_budget = max(_SUBLANES, lp_budget // (2 * tv * itemsize))
    row_tile = min(rows_budget, 2048, _round_up(n, _SUBLANES))
    if n > _SUBLANES:
        # Keep >= 2 row blocks so the "parallel" axis can shard across the two
        # TensorCores on v7x.
        row_tile = min(row_tile, _round_up((n + 1) // 2, _SUBLANES))
    row_tile = max(_SUBLANES, (row_tile // _SUBLANES) * _SUBLANES)
    num_row_blocks = pl.cdiv(n, row_tile)

    # Only the tiny target vector is padded (padded rows => pad_index => 0 loss);
    # the big (N, V) tensor is NOT copied.
    n_pad = num_row_blocks * row_tile
    tgt_p = jnp.pad(tgt, (0, n_pad - n), constant_values=pad_index).reshape(-1, 1)

    n_groups = row_tile // _SUBLANES
    kernel = functools.partial(
        _xent_kernel, pad_index=int(pad_index), smoothing=float(smoothing),
        vocab=int(vocab), row_tile=int(row_tile), vocab_tile=int(tv),
        unroll=max(1, min(8, n_groups)))

    vmem_limit = (2 * row_tile * tv * itemsize          # lp double buffer
                  + 2 * row_tile * 4                    # target double buffer
                  + 2 * _SUBLANES * _LANES * 4          # output accumulator
                  + (16 << 20))                         # compiler slack
    vmem_limit = int(min(max(vmem_limit, 16 << 20), vmem_cap))

    partials = pl.pallas_call(
        kernel,
        out_shape=jax.ShapeDtypeStruct((num_row_blocks * _SUBLANES, _LANES),
                                       jnp.float32),
        grid_spec=pltpu.PrefetchScalarGridSpec(
            num_scalar_prefetch=0,
            grid=(num_row_blocks, num_v_blocks),
            in_specs=[
                pl.BlockSpec((row_tile, tv), lambda i, j: (i, j)),
                pl.BlockSpec((row_tile, 1), lambda i, j: (i, 0)),
            ],
            out_specs=pl.BlockSpec((_SUBLANES, _LANES), lambda i, j: (i, 0)),
        ),
        compiler_params=pltpu.CompilerParams(
            dimension_semantics=("parallel", "arbitrary"),
            vmem_limit_bytes=vmem_limit,
        ),
    )(lp, tgt_p)

    # loss = sum_rows [ sum_j p_j*log p_j ] - sum_rows sum_j p_j * log_prob_j
    # The entropy term is a per-non-pad-row constant, applied here (not in-kernel).
    if smoothing > 0.0:
        uni = float(smoothing) / float(vocab - 2)
        w_tgt = 1.0 - float(smoothing)
        const_c = 0.0
        if w_tgt > 0.0:
            const_c += w_tgt * math.log(w_tgt)
        if uni > 0.0:
            const_c += float(smoothing) * math.log(uni)
        n_nonpad = jnp.sum((tgt != pad_index).astype(jnp.float32))
        const_total = const_c * n_nonpad
    else:
        const_total = 0.0

    return const_total - jnp.sum(partials)


def _reference(log_probs, targets, *, pad_index, smoothing):
    """Pure-JAX reference matching the PyTorch NLLLoss / KLDivLoss semantics."""
    vocab = log_probs.shape[-1]
    lp = log_probs.reshape(-1, vocab).astype(jnp.float32)
    tgt = targets.reshape(-1).astype(jnp.int32)
    not_pad = tgt != pad_index
    if smoothing <= 0.0:
        picked = jnp.take_along_axis(lp, tgt[:, None], axis=1)[:, 0]
        return -jnp.sum(jnp.where(not_pad, picked, 0.0))
    col = jnp.arange(vocab)[None, :]
    onehot = col == tgt[:, None]
    p = jnp.where(onehot, 1.0 - smoothing, smoothing / (vocab - 2))
    p = jnp.where(col == pad_index, 0.0, p)
    p = jnp.where(not_pad[:, None], p, 0.0)
    term = jnp.where(p > 0, p * (jnp.log(jnp.where(p > 0, p, 1.0)) - lp), 0.0)
    return jnp.sum(term)


if __name__ == "__main__":
    key = jax.random.PRNGKey(0)
    batch, seq, vocab = 2, 8, 32
    pad_index = 1

    k1, k2 = jax.random.split(key)
    logits = jax.random.normal(k1, (batch, seq, vocab), dtype=jnp.float32)
    log_probs = jax.nn.log_softmax(logits, axis=-1)
    targets = jax.random.randint(k2, (batch, seq), 0, vocab, dtype=jnp.int32)
    # Inject padding positions so ignore_index / row-zeroing paths are exercised.
    targets = targets.at[0, 0].set(pad_index).at[1, 3].set(pad_index)

    # Mode 1: no smoothing (NLLLoss, reduction='sum', ignore_index=pad)
    loss_nll = jax.block_until_ready(
        xent_loss(log_probs, targets, pad_index=pad_index, smoothing=0.0))
    ref_nll = _reference(log_probs, targets, pad_index=pad_index, smoothing=0.0)
    assert jnp.allclose(loss_nll, ref_nll, rtol=1e-5, atol=1e-4), (loss_nll, ref_nll)

    # Mode 2: label smoothing (KLDivLoss, reduction='sum')
    loss_kl = jax.block_until_ready(
        xent_loss(log_probs, targets, pad_index=pad_index, smoothing=0.1))
    ref_kl = _reference(log_probs, targets, pad_index=pad_index, smoothing=0.1)
    assert jnp.allclose(loss_kl, ref_kl, rtol=1e-5, atol=1e-4), (loss_kl, ref_kl)

    print("KERNEL_OK")
</pallas_src>

<mosaic_0001>
module attributes {stable_mosaic.version = 11 : i64} {
  func.func @_xent_kernel(%arg0: i32, %arg1: i32, %arg2: memref<8x128xf32, #tpu.memory_space<vmem>>, %arg3: memref<8x1xi32, #tpu.memory_space<vmem>>, %arg4: memref<8x128xf32, #tpu.memory_space<vmem>>) attributes {dimension_semantics = [#tpu.dimension_semantics<parallel>, #tpu.dimension_semantics<arbitrary>], iteration_bounds = array<i64: 2, 1>, scalar_prefetch = 0 : i64, scratch_operands = 0 : i64, tpu.core_type = #tpu.core_type<tc>, window_params = [{transform_indices = @transform_0, window_bounds = array<i64: 8, 128>}, {transform_indices = @transform_1, window_bounds = array<i64: 8, 1>}, {transform_indices = @transform_2, window_bounds = array<i64: 8, 128>}]} {
    %c128_i32 = arith.constant 128 : i32
    %0 = arith.muli %arg1, %c128_i32 : i32
    %1 = tpu.iota {dimensions = array<i32: 1>} : vector<1x128xi32>
    %cst = arith.constant 0.000000e+00 : f32
    %2 = vector.broadcast %cst : f32 to vector<8x128xf32>
    %c0_i32 = arith.constant 0 : i32
    %3 = arith.addi %0, %c0_i32 : i32
    %4 = vector.broadcast %3 : i32 to vector<1x128xi32>
    %5 = arith.addi %1, %4 : vector<1x128xi32>
    %c0_i32_0 = arith.constant 0 : i32
    %c8_i32 = arith.constant 8 : i32
    %6 = arith.muli %c0_i32_0, %c8_i32 : i32
    %7 = tpu.assume_multiple %6, 8 : i32
    %8 = arith.index_cast %7 : i32 to index
    %c0 = arith.constant 0 : index
    %9 = vector.load %arg3[%8, %c0] : memref<8x1xi32, #tpu.memory_space<vmem>>, vector<8x1xi32>
    %10 = arith.index_cast %7 : i32 to index
    %c0_1 = arith.constant 0 : index
    %11 = vector.load %arg2[%10, %c0_1] : memref<8x128xf32, #tpu.memory_space<vmem>>, vector<8x128xf32>
    %12 = vector.broadcast %5 : vector<1x128xi32> to vector<8x128xi32>
    %13 = vector.broadcast %9 : vector<8x1xi32> to vector<8x128xi32>
    %14 = arith.cmpi eq, %12, %13 : vector<8x128xi32>
    %c1_i32 = arith.constant 1 : i32
    %15 = vector.broadcast %c1_i32 : i32 to vector<8x1xi32>
    %16 = arith.cmpi ne, %9, %15 : vector<8x1xi32>
    %17 = vector.broadcast %16 : vector<8x1xi1> to vector<8x128xi1>
    %18 = arith.andi %14, %17 : vector<8x128xi1>
    %cst_2 = arith.constant 0.000000e+00 : f32
    %19 = vector.broadcast %cst_2 : f32 to vector<8x128xf32>
    %20 = arith.select %18, %11, %19 : vector<8x128xi1>, vector<8x128xf32>
    %21 = arith.addf %2, %20 : vector<8x128xf32>
    %c1_i32_3 = arith.constant 1 : i32
    %c0_i32_4 = arith.constant 0 : i32
    %22 = arith.cmpi eq, %arg1, %c0_i32_4 : i32
    %23 = arith.extui %22 : i1 to i32
    %c0_i32_5 = arith.constant 0 : i32
    %24 = arith.cmpi ne, %23, %c0_i32_5 : i32
    scf.if %24 {
      %cst_10 = arith.constant 0.000000e+00 : f32
      %28 = vector.broadcast %cst_10 : f32 to vector<8x128xf32>
      %c0_11 = arith.constant 0 : index
      %c0_12 = arith.constant 0 : index
      %29 = vector.load %arg4[%c0_11, %c0_12] : memref<8x128xf32, #tpu.memory_space<vmem>>, vector<8x128xf32>
      tpu.vector_store %arg4[%c0_11, %c0_12], %28 {strides = array<i32>} : memref<8x128xf32, #tpu.memory_space<vmem>>, vector<8x128xf32>,
    } else {
    }
    %c0_6 = arith.constant 0 : index
    %c0_7 = arith.constant 0 : index
    %25 = vector.load %arg4[%c0_6, %c0_7] : memref<8x128xf32, #tpu.memory_space<vmem>>, vector<8x128xf32>
    %26 = arith.addf %25, %21 : vector<8x128xf32>
    %c0_8 = arith.constant 0 : index
    %c0_9 = arith.constant 0 : index
    %27 = vector.load %arg4[%c0_8, %c0_9] : memref<8x128xf32, #tpu.memory_space<vmem>>, vector<8x128xf32>
    tpu.vector_store %arg4[%c0_8, %c0_9], %26 {strides = array<i32>} : memref<8x128xf32, #tpu.memory_space<vmem>>, vector<8x128xf32>,
    return
  }
  func.func @transform_0(%arg0: i32, %arg1: i32) -> (i32, i32) {
    %c0_i32 = arith.constant 0 : i32
    return %arg0, %arg1 : i32, i32
  }
  func.func @transform_1(%arg0: i32, %arg1: i32) -> (i32, i32) {
    %c0_i32 = arith.constant 0 : i32
    %c0_i32_0 = arith.constant 0 : i32
    return %arg0, %c0_i32 : i32, i32
  }
  func.func @transform_2(%arg0: i32, %arg1: i32) -> (i32, i32) {
    %c0_i32 = arith.constant 0 : i32
    %c0_i32_0 = arith.constant 0 : i32
    return %arg0, %c0_i32 : i32, i32
  }
}

</mosaic_0001>

<llo_original>
// kernel: tpu_custom_call.1
$region0: #{tpu_custom_call.1}
  #allocation0 [shape = 'u32[]', space=smem, size = 0x4, offset = 0x4, fixed_abs, tag = 'smem constant byte address 0x4 - core index']
  #allocation1 [shape = 'u32[144,128]{1,0:T(1,128)}', space=vmem, size = 0x12000, scoped, tag = 'internal scratch']
  %s0 = inlined_call_operand.vmem [shape: f32[16,32], index: 0, kind: input, shape index: {}]
  %s1 = inlined_call_operand.vmem [shape: s32[16,1], index: 1, kind: input, shape index: {}]
  %s2 = inlined_call_operand.hbm [shape: f32[16,128], index: 2, kind: output, shape index: {}]
  %s3 = sld [smem:[#allocation0]]
  $region45: #{tpu_custom_call.1} parent=0
    _
  %s5 = ssub.s32 1, %s3
  %s6 = scalar_select 0, %s5, %s3
  $region1: #{tpu_custom_call.1} parent=0
    #allocation2 [shape = 'u8[8192]{0}', space=vmem, size = 0x2000, scoped, tag = 'output window, operand 0']
    #allocation3 [shape = 's32[2]{0}', space=sflag, size = 0x8, scoped, tag = 'scoped memory for tpu_custom_call.1']
    %7 = vsyncpa [#allocation3], 0
    %s8 = scalar_lea.sflag [#allocation3], 1
    %9 = vsyncpa %s8, 0
    loop: start=0, step=1, limit=4
    $region2: #{tpu_custom_call.1} parent=1 // loop_pre_header
      _
    $region3: #{tpu_custom_call.1} parent=1 // loop_header
      %s11 = sphi 0, %s15
      %p12 = scmp.ge.s32.totalorder %s11, 4
      %s18 = sphi 0, %s30
      %s19 = sphi 0, %s26
      %s20 = sphi 0, %s18
      %s21 = sphi 0, %s19
      %s22 = sphi 0, %s20
      %s23 = sphi 0, %s21
      %s35 = sphi 0, %s37
      %s38 = sphi 0, %s35
      %s39 = sphi 0, %s38
      %s55 = sphi 0, %s39
      %s61 = sphi 0, %s63
      %s64 = sphi 0, %s61
      %s65 = sphi 0, %s64
      %s81 = sphi 0, %s65
      %s87 = sphi 0, %s89
      %s90 = sphi 0, %s87
      %s91 = sphi 0, %s90
      %s107 = sphi 0, %s91
    $region4: #{tpu_custom_call.1} parent=1 // loop_header_branch
      %14 = sbr.rel (%p12) target = $region8
    $region5: #{tpu_custom_call.1} parent=1 // loop_body
      %s16 = ssub.s32 %s11, 1
      %s17 = ssub.s32 %s11, 2
      %s24 = sadd.s32 1, %s19
      %p25 = scmp.ge.s32.totalorder %s24, 1
      %s26 = scalar_select %p25, 0, %s24
      %s27 = sadd.s32 1, %s18
      %s28 = scalar_select %p25, %s27, %s18
      %p29 = scmp.ge.s32.totalorder %s28, 2
      %s30 = scalar_select %p29, 0, %s28
      %s31 = ssub.s32 %s18, %s30
      %s32 = ssub.s32 %s19, %s26
      %s33 = sor.u32 %s31, %s32
      %p34 = scmp.eq.s32.totalorder %s33, 0
      %s36 = sadd.s32 %s35, 1
      %s37 = scalar_select %p34, %s35, %s36
      %p40 = pneg %p34
      %p41 = scmp.eq.s32.totalorder %s11, 1
      %p42 = por %p40, %p41
      %p43 = scmp.ne.s32.totalorder %s35, %s38
      %p44 = scmp.eq.s32.totalorder %s11, 0
      %p45 = por %p43, %p44
      %p46 = scmp.ne.s32.totalorder %s35, %s38
      %p47 = scmp.eq.s32.totalorder %s16, 1
      %p48 = por %p46, %p47
      %p49 = scmp.ne.s32.totalorder %s38, %s39
      %p50 = scmp.eq.s32.totalorder %s16, 0
      %p51 = por %p49, %p50
      %p52 = scmp.ne.s32.totalorder %s38, %s39
      %p53 = scmp.eq.s32.totalorder %s17, 1
      %p54 = por %p52, %p53
      %p56 = scmp.ne.s32.totalorder %s39, %s55
      %p57 = scmp.eq.s32.totalorder %s17, 0
      %p58 = por %p56, %p57
      %s59 = ssub.s32 %s18, %s30
      %p60 = scmp.eq.s32.totalorder %s59, 0
      %s62 = sadd.s32 %s61, 1
      %s63 = scalar_select %p60, %s61, %s62
      %p66 = pneg %p60
      %p67 = scmp.eq.s32.totalorder %s11, 1
      %p68 = por %p66, %p67
      %p69 = scmp.ne.s32.totalorder %s61, %s64
      %p70 = scmp.eq.s32.totalorder %s11, 0
      %p71 = por %p69, %p70
      %p72 = scmp.ne.s32.totalorder %s61, %s64
      %p73 = scmp.eq.s32.totalorder %s16, 1
      %p74 = por %p72, %p73
      %p75 = scmp.ne.s32.totalorder %s64, %s65
      %p76 = scmp.eq.s32.totalorder %s16, 0
      %p77 = por %p75, %p76
      %p78 = scmp.ne.s32.totalorder %s64, %s65
      %p79 = scmp.eq.s32.totalorder %s17, 1
      %p80 = por %p78, %p79
      %p82 = scmp.ne.s32.totalorder %s65, %s81
      %p83 = scmp.eq.s32.totalorder %s17, 0
      %p84 = por %p82, %p83
      %s85 = ssub.s32 %s18, %s30
      %p86 = scmp.eq.s32.totalorder %s85, 0
      %s88 = sadd.s32 %s87, 1
      %s89 = scalar_select %p86, %s87, %s88
      %p92 = pneg %p86
      %p93 = scmp.eq.s32.totalorder %s11, 1
      %p94 = por %p92, %p93
      %p95 = scmp.ne.s32.totalorder %s87, %s90
      %p96 = scmp.eq.s32.totalorder %s11, 0
      %p97 = por %p95, %p96
      %p98 = scmp.ne.s32.totalorder %s87, %s90
      %p99 = scmp.eq.s32.totalorder %s16, 1
      %p100 = por %p98, %p99
      %p101 = scmp.ne.s32.totalorder %s90, %s91
      %p102 = scmp.eq.s32.totalorder %s16, 0
      %p103 = por %p101, %p102
      %p104 = scmp.ne.s32.totalorder %s90, %s91
      %p105 = scmp.eq.s32.totalorder %s17, 1
      %p106 = por %p104, %p105
      %p108 = scmp.ne.s32.totalorder %s91, %s107
      %p109 = scmp.eq.s32.totalorder %s17, 0
      %p110 = por %p108, %p109
      %p111 = scmp.le.s32.totalorder 1, %s11
      %p112 = scmp.lt.s32.totalorder %s11, 3
      %p113 = pnand %p111, %p112
      %p114 = pneg %p113
      // Predicated region
      $region9: #{tpu_custom_call.1} parent=5 // pred_check
        _
      $region10: #{tpu_custom_call.1} parent=5 // pred_check_branch
        %116 = sbr.rel (%p113) target = $region12
      $region11: #{tpu_custom_call.1} parent=5 // pred_region
        %s117 = ssub.s32 %s11, 1
      $region12: #{tpu_custom_call.1} parent=5 // pred_fallthru
        _
      %p118 = scmp.lt.s32.totalorder %s11, 2
      // Predicated region
      $region13: #{tpu_custom_call.1} parent=5 // pred_check
        %p119 = pneg %p118
      $region14: #{tpu_custom_call.1} parent=5 // pred_check_branch
        %121 = sbr.rel (%p119) target = $region16
      $region15: #{tpu_custom_call.1} parent=5 // pred_region
        // Predicated region
        $region17: #{tpu_custom_call.1} parent=15 // pred_check
          %p122 = pneg %p45
        $region18: #{tpu_custom_call.1} parent=15 // pred_check_branch
          %124 = sbr.rel (%p122) target = $region20
        $region19: #{tpu_custom_call.1} parent=15 // pred_region
          %p125 = scmp.lt.s32.totalorder %s18, 1
          %s126 = scalar_select %p125, %s18, 1
          %p127 = scmp.lt.s32.totalorder %s19, 0
          %s128 = scalar_select %p127, %s19, 0
          %s129 = sadd.s32 %s128, %s126
          %s130 = smul.addr %s129, 8
          %s131 = scalar_lea.vmem %s0, %s130
        $region20: #{tpu_custom_call.1} parent=15 // pred_fallthru
          _
        // Predicated region
        $region21: #{tpu_custom_call.1} parent=15 // pred_check
          %p132 = pneg %p71
        $region22: #{tpu_custom_call.1} parent=15 // pred_check_branch
          %134 = sbr.rel (%p132) target = $region24
        $region23: #{tpu_custom_call.1} parent=15 // pred_region
          %p135 = scmp.lt.s32.totalorder %s18, 1
          %s136 = scalar_select %p135, %s18, 1
          %s137 = smul.addr %s136, 8
          %s138 = scalar_lea.vmem %s1, %s137
        $region24: #{tpu_custom_call.1} parent=15 // pred_fallthru
          _
      $region16: #{tpu_custom_call.1} parent=5 // pred_fallthru
        _
      %p139 = scmp.le.s32.totalorder 1, %s11
      %p140 = scmp.lt.s32.totalorder %s11, 3
      %p141 = pnand %p139, %p140
      %p142 = pneg %p141
      // Predicated region
      $region25: #{tpu_custom_call.1} parent=5 // pred_check
        _
      $region26: #{tpu_custom_call.1} parent=5 // pred_check_branch
        %144 = sbr.rel (%p141) target = $region28
      $region27: #{tpu_custom_call.1} parent=5 // pred_region
        %s145 = ssub.s32 %s11, 1
        %p146 = scmp.lt.s32.totalorder %s20, 1
        %s147 = scalar_select %p146, %s20, 1
        %p148 = scmp.lt.s32.totalorder %s21, 0
        %s149 = scalar_select %p148, %s21, 0
        %s150 = sadd.s32 %s149, %s147
        %s151 = smul.addr %s150, 8
        %s152 = scalar_lea.vmem %s0, %s151
        %p153 = pneg %p51
        %p154 = pneg %p48
        %p155 = scmp.lt.s32.totalorder %s20, 1
        %s156 = scalar_select %p155, %s20, 1
        %s157 = smul.addr %s156, 8
        %s158 = scalar_lea.vmem %s1, %s157
        %p159 = pneg %p77
        %p160 = pneg %p74
        %p161 = pneg %p103
        %p162 = pneg %p100
        %s163 = sand.u32 %s90, 1
        %s164 = scalar_lea.sflag [#allocation3], %s163
        %s165 = sand.u32 %s90, 1
        %s166 = smul.addr %s165, 8
        %s167 = scalar_lea.vmem [#allocation2], %s166
        %p168 = scmp.lt.s32.totalorder %s20, 1
        %s169 = scalar_select %p168, %s20, 1
        %p170 = scmp.lt.s32.totalorder %s21, 0
        %s171 = scalar_select %p170, %s21, 0
        %s172 = sadd.s32 %s171, %s169
        %s173 = smul.addr %s172, 8
        %s174 = scalar_lea.vmem %s0, %s173
        %p175 = scmp.lt.s32.totalorder %s20, 1
        %s176 = scalar_select %p175, %s20, 1
        %s177 = smul.addr %s176, 8
        %s178 = scalar_lea.vmem %s1, %s177
        %s179 = smul.u32 %s21, 128
        %v180 = vlaneseq
        %v181 = vand.u32 %v180, 127
        %v182 = vstv %s179
        %v183 = vadd.s32 %v181, %v182
        %v184 = vld [vmem:[%s178] sm:$0xff]
        %v185 = vld [vmem:[%s174] sm:$0xff]
        %186 = vset.pattern.permute.xlu0 0
        %187 = vperm.xlu0 %186, %v184
        %v188 = vpop.permute.xlu0 %187
        %vm189 = vcmp.eq.s32.totalorder %v183, %v188
        %vm190 = vcmp.ne.s32.totalorder %v184, 1
        %v191 = vsel %vm190, 1, 0
        %192 = vset.pattern.permute.xlu0 0
        %193 = vperm.xlu0 %192, %v191
        %v194 = vpop.permute.xlu0 %193
        %vm195 = vcmp.eq.s32.totalorder %v194, 1
        %vm196 = vmand %vm189, %vm195
        %v197 = vsel %vm196, %v185, 0.0
        %v198 = vadd.f32 %v197, 0.0
        %p199 = scmp.eq.s32.totalorder %s21, 0
        // Predicated region
        $region29: #{tpu_custom_call.1} parent=27 // pred_check
          %p200 = pneg %p199
        $region30: #{tpu_custom_call.1} parent=27 // pred_check_branch
          %202 = sbr.rel (%p200) target = $region32
        $region31: #{tpu_custom_call.1} parent=27 // pred_region
          %203 = vst [vmem:[%s167] sm:$0xff] 0.0
        $region32: #{tpu_custom_call.1} parent=27 // pred_fallthru
          _
        %v204 = vld [vmem:[%s167] sm:$0xff]
        %v205 = vadd.f32 %v204, %v198
        %206 = vst [vmem:[%s167] sm:$0xff] %v205
        %s207 = sand.u32 %s90, 1
        %s208 = scalar_lea.sflag [#allocation3], %s207
        %s209 = sand.u32 %s90, 1
        %s210 = smul.addr %s209, 8
        %s211 = scalar_lea.vmem [#allocation2], %s210
        // Predicated region
        $region33: #{tpu_custom_call.1} parent=27 // pred_check
          %p212 = pneg %p100
        $region34: #{tpu_custom_call.1} parent=27 // pred_check_branch
          %214 = sbr.rel (%p212) target = $region36
        $region35: #{tpu_custom_call.1} parent=27 // pred_region
          %s216 = ssub.s32 128, 128
          %217 = vsyncadd %s208, %s216
          %s218 = smul.addr %s20, 128
          %s219 = scalar_lea.hbm %s2, %s218
          %s221 = sshll.u32 %s211, 4
          %s222 = int_to_ptr.vmem [resolvable:$true] %s221
          %224 = dma.vmem_to_hbm [thread:$0]  %s222, 128, %s219, %s208
        $region36: #{tpu_custom_call.1} parent=27 // pred_fallthru
          _
      $region28: #{tpu_custom_call.1} parent=5 // pred_fallthru
        _
      %p225 = scmp.le.s32.totalorder 2, %s11
      // Predicated region
      $region37: #{tpu_custom_call.1} parent=5 // pred_check
        %p226 = pneg %p225
      $region38: #{tpu_custom_call.1} parent=5 // pred_check_branch
        %228 = sbr.rel (%p226) target = $region40
      $region39: #{tpu_custom_call.1} parent=5 // pred_region
        %s229 = ssub.s32 %s11, 2
        // Predicated region
        $region41: #{tpu_custom_call.1} parent=39 // pred_check
          %p230 = pneg %p106
        $region42: #{tpu_custom_call.1} parent=39 // pred_check_branch
          %232 = sbr.rel (%p230) target = $region44
        $region43: #{tpu_custom_call.1} parent=39 // pred_region
          %s233 = sand.u32 %s91, 1
          %s234 = scalar_lea.sflag [#allocation3], %s233
          %s235 = sand.u32 %s91, 1
          %s236 = smul.addr %s235, 8
          %s237 = scalar_lea.vmem [#allocation2], %s236
          %238 = dma.done %s234, 128
        $region44: #{tpu_custom_call.1} parent=39 // pred_fallthru
          _
      $region40: #{tpu_custom_call.1} parent=5 // pred_fallthru
        _
    $region6: #{tpu_custom_call.1} parent=1 // loop_footer
      %s15 = sadd.s32 1, %s11
    $region7: #{tpu_custom_call.1} parent=1 // loop_footer_branch
      %10 = sbr.rel target = $region3
    $region8: #{tpu_custom_call.1} parent=1 // loop_exit
      _
    %239 = vsyncpa [#allocation3], 1
    %s240 = scalar_lea.sflag [#allocation3], 1
    %241 = vsyncpa %s240, 1

</llo_original>
